<compile_context>
chip_gen: v6e
topology: v6e:2x2x1
jax: 0.10.0
libtpu: 0.0.40
codegen_flags: <defaults>
</compile_context>

<pallas_src>
import functools

import jax
import jax.numpy as jnp
from jax.experimental import pallas as pl
from jax.experimental.pallas import tpu as pltpu


def _rope_kernel(x_ref, cos_ref, sin_ref, o_ref, *, head_dim):
    """x_ref/o_ref: (bhb, sb, L); cos_ref/sin_ref: (sb, L); L = pack * head_dim.

    sin_ref is pre-signed host-side: the FIRST head_dim//2 lanes of every
    head_dim-lane group are negated, so rotate_half reduces to an unsigned
    half-swap inside each head_dim-lane group.
    """
    x = x_ref[...]
    cos = cos_ref[...]
    sin = sin_ref[...]

    half = head_dim // 2
    lanes = x.shape[-1]

    if lanes % 128 == 0:
        # XLU path: two lane rotations (free slot) + one VPU select.
        r_fwd = pltpu.roll(x, half, axis=x.ndim - 1)           # r_fwd[i] = x[i - half]
        r_bwd = pltpu.roll(x, lanes - half, axis=x.ndim - 1)   # r_bwd[i] = x[i + half]
        lane = jax.lax.broadcasted_iota(jnp.int32, x.shape, x.ndim - 1)
        rot = jnp.where((lane % head_dim) < half, r_bwd, r_fwd)
    else:
        # Fallback for non-lane-aligned rows (e.g. unpacked decode, S == 1):
        # unsigned half-swap of the whole (head_dim-wide) row.
        rot = jnp.concatenate([x[..., half:], x[..., :half]], axis=-1)

    out = x * cos[None, :, :] + rot * sin[None, :, :]
    o_ref[...] = out.astype(o_ref.dtype)


def falcon_rotary_embedding(x, cos_cached, sin_cached, token_idx=None, *,
                            bh_tile=16, seq_tile_rows=512):
    """Apply Falcon rotary embedding.

    x:          [B, H, S, D]
    cos_cached: [max_seq, D]
    sin_cached: [max_seq, D]
    token_idx:  optional decode position (cos/sin row applied to all S rows)
    returns:    [B, H, S, D], same dtype as x
    """
    B, H, S, D = x.shape
    assert S <= cos_cached.shape[0], (
        "seq_len exceeds max_seq_len_cached in RotaryEmbedding!"
    )
    assert D % 2 == 0

    if token_idx is None:
        cos = cos_cached[:S]
        sin = sin_cached[:S]
    else:
        cos = jnp.broadcast_to(cos_cached[token_idx], (S, D))
        sin = jnp.broadcast_to(sin_cached[token_idx], (S, D))

    # Fold rotate_half's sign into sin: rotate_half(x)[:D/2] == -x[D/2:], so the
    # FIRST half of each head_dim group of sin gets the minus sign.
    sign = jnp.concatenate([
        jnp.full((D // 2,), -1.0, dtype=jnp.float32),
        jnp.full((D // 2,), 1.0, dtype=jnp.float32),
    ])
    cos = cos.astype(x.dtype)
    sin = (sin.astype(jnp.float32) * sign).astype(x.dtype)

    # Lane-dense packing: pack consecutive sequence positions into one 128-lane
    # row (contiguous reshape, no data movement). Rotation stays confined to
    # each head_dim-lane group inside the kernel.
    if D < 128 and 128 % D == 0 and S % (128 // D) == 0:
        pack = 128 // D
    else:
        pack = 1
    L = pack * D
    Sp = S // pack
    BH = B * H

    xr = x.reshape(BH, Sp, L)
    cosr = cos.reshape(Sp, L)
    sinr = sin.reshape(Sp, L)

    # Tile sizing: large tiles to amortize per-step pipeline overhead, but keep
    # >=2 grid steps over BH when possible so both v7x TensorCores get work.
    bhb = max(1, min(bh_tile, pl.cdiv(BH, 2)))
    sb = min(Sp, seq_tile_rows)
    if sb != Sp:
        sb = max(8, (sb // 8) * 8)   # second-to-last block dim multiple of 8

    grid = (pl.cdiv(BH, bhb), pl.cdiv(Sp, sb))

    itemsize = jnp.dtype(x.dtype).itemsize
    tile_bytes = bhb * sb * L * itemsize
    cs_bytes = sb * L * itemsize
    # Double-buffered in + out tiles, double-buffered cos/sin, plus headroom.
    vmem_needed = 4 * tile_bytes + 4 * cs_bytes + (8 << 20)
    vmem_limit = int(min(max(vmem_needed, 32 << 20), 48 << 20))

    out = pl.pallas_call(
        functools.partial(_rope_kernel, head_dim=D),
        out_shape=jax.ShapeDtypeStruct((BH, Sp, L), x.dtype),
        grid_spec=pltpu.PrefetchScalarGridSpec(
            num_scalar_prefetch=0,
            grid=grid,
            in_specs=[
                pl.BlockSpec((bhb, sb, L), lambda i, j: (i, j, 0)),
                pl.BlockSpec((sb, L), lambda i, j: (j, 0)),
                pl.BlockSpec((sb, L), lambda i, j: (j, 0)),
            ],
            out_specs=pl.BlockSpec((bhb, sb, L), lambda i, j: (i, j, 0)),
        ),
        compiler_params=pltpu.CompilerParams(
            dimension_semantics=("parallel", "parallel"),
            vmem_limit_bytes=vmem_limit,
        ),
    )(xr, cosr, sinr)

    return out.reshape(B, H, S, D)


def build_rope_cache(dim, max_position_embeddings=2048, base=10000.0,
                     dtype=jnp.float32):
    """Deterministic cos/sin caches, same construction as the module __init__."""
    inv_freq = 1.0 / (base ** (jnp.arange(0, dim, 2, dtype=jnp.float32) / dim))
    t = jnp.arange(max_position_embeddings, dtype=jnp.float32)
    freqs = jnp.einsum("i,j->ij", t, inv_freq)          # [max_seq, dim/2]
    emb = jnp.concatenate([freqs, freqs], axis=-1)      # [max_seq, dim]
    return jnp.cos(emb).astype(dtype), jnp.sin(emb).astype(dtype)


def _reference_rope(x, cos_cached, sin_cached, token_idx=None):
    S = x.shape[2]
    D = x.shape[3]
    if token_idx is None:
        cos = cos_cached[:S][None, None]    # [1,1,S,D]
        sin = sin_cached[:S][None, None]
    else:
        cos = jnp.broadcast_to(cos_cached[token_idx], (S, D))[None, None]
        sin = jnp.broadcast_to(sin_cached[token_idx], (S, D))[None, None]
    x1 = x[..., : D // 2]
    x2 = x[..., D // 2:]
    rot = jnp.concatenate([-x2, x1], axis=-1)
    return x * cos + rot * sin


if __name__ == "__main__":
    key = jax.random.PRNGKey(0)

    # Small Falcon-like shapes: batch=2, heads=4, seq=16, head_dim=64
    B, H, S, D = 2, 4, 16, 64
    MAX_SEQ = 64

    x = jax.random.normal(key, (B, H, S, D), dtype=jnp.float32)
    cos_cached, sin_cached = build_rope_cache(D, max_position_embeddings=MAX_SEQ)

    # Prefill path (token_idx=None)
    out = falcon_rotary_embedding(x, cos_cached, sin_cached)
    out = jax.block_until_ready(out)
    ref = _reference_rope(x, cos_cached, sin_cached)
    assert out.shape == (B, H, S, D)
    assert jnp.allclose(out, ref, atol=1e-5, rtol=1e-5), "prefill mismatch vs reference"

    # Decode path (single token at position token_idx)
    tok = 7
    x_dec = x[:, :, :1, :]
    out_dec = falcon_rotary_embedding(x_dec, cos_cached, sin_cached, token_idx=tok)
    out_dec = jax.block_until_ready(out_dec)
    ref_dec = _reference_rope(x_dec, cos_cached, sin_cached, token_idx=tok)
    assert jnp.allclose(out_dec, ref_dec, atol=1e-5, rtol=1e-5), "decode mismatch vs reference"

    print("KERNEL_OK")
</pallas_src>

<mosaic_0001>
module attributes {stable_mosaic.version = 11 : i64} {
  func.func @_rope_kernel(%arg0: i32, %arg1: i32, %arg2: memref<4x8x128xf32, #tpu.memory_space<vmem>>, %arg3: memref<8x128xf32, #tpu.memory_space<vmem>>, %arg4: memref<8x128xf32, #tpu.memory_space<vmem>>, %arg5: memref<4x8x128xf32, #tpu.memory_space<vmem>>) attributes {dimension_semantics = [#tpu.dimension_semantics<parallel>, #tpu.dimension_semantics<parallel>], iteration_bounds = array<i64: 2, 1>, scalar_prefetch = 0 : i64, scratch_operands = 0 : i64, tpu.core_type = #tpu.core_type<tc>, window_params = [{transform_indices = @transform_0, window_bounds = array<i64: 4, 8, 128>}, {transform_indices = @transform_1, window_bounds = array<i64: 8, 128>}, {transform_indices = @transform_2, window_bounds = array<i64: 8, 128>}, {transform_indices = @transform_3, window_bounds = array<i64: 4, 8, 128>}]} {
    %c0 = arith.constant 0 : index
    %c0_0 = arith.constant 0 : index
    %c0_1 = arith.constant 0 : index
    %0 = vector.load %arg2[%c0, %c0_0, %c0_1] : memref<4x8x128xf32, #tpu.memory_space<vmem>>, vector<4x8x128xf32>
    %c0_2 = arith.constant 0 : index
    %c0_3 = arith.constant 0 : index
    %1 = vector.load %arg3[%c0_2, %c0_3] : memref<8x128xf32, #tpu.memory_space<vmem>>, vector<8x128xf32>
    %c0_4 = arith.constant 0 : index
    %c0_5 = arith.constant 0 : index
    %2 = vector.load %arg4[%c0_4, %c0_5] : memref<8x128xf32, #tpu.memory_space<vmem>>, vector<8x128xf32>
    %c32_i32 = arith.constant 32 : i32
    %3 = tpu.dynamic_rotate %0 by %c32_i32 dim 2 : vector<4x8x128xf32>, i32 -> vector<4x8x128xf32>
    %c96_i32 = arith.constant 96 : i32
    %4 = tpu.dynamic_rotate %0 by %c96_i32 dim 2 : vector<4x8x128xf32>, i32 -> vector<4x8x128xf32>
    %5 = tpu.iota {dimensions = array<i32: 2>} : vector<4x8x128xi32>
    %c64_i32 = arith.constant 64 : i32
    %c0_i32 = arith.constant 0 : i32
    %6 = arith.cmpi eq, %c64_i32, %c0_i32 : i32
    %c1_i32 = arith.constant 1 : i32
    %7 = arith.select %6, %c1_i32, %c64_i32 : i32
    %8 = vector.broadcast %7 : i32 to vector<4x8x128xi32>
    %9 = arith.remsi %5, %8 : vector<4x8x128xi32>
    %c0_i32_6 = arith.constant 0 : i32
    %10 = vector.broadcast %c0_i32_6 : i32 to vector<4x8x128xi32>
    %11 = arith.cmpi ne, %9, %10 : vector<4x8x128xi32>
    %c0_i32_7 = arith.constant 0 : i32
    %12 = vector.broadcast %c0_i32_7 : i32 to vector<4x8x128xi32>
    %13 = arith.cmpi slt, %9, %12 : vector<4x8x128xi32>
    %c0_i32_8 = arith.constant 0 : i32
    %14 = arith.cmpi slt, %7, %c0_i32_8 : i32
    %15 = vector.broadcast %14 : i1 to vector<4x8x128xi1>
    %16 = vector.broadcast %15 : vector<4x8x128xi1> to vector<4x8x128xi1>
    %17 = arith.xori %13, %16 : vector<4x8x128xi1>
    %18 = arith.andi %17, %11 : vector<4x8x128xi1>
    %19 = vector.broadcast %7 : i32 to vector<4x8x128xi32>
    %20 = arith.addi %9, %19 : vector<4x8x128xi32>
    %21 = arith.select %18, %20, %9 : vector<4x8x128xi1>, vector<4x8x128xi32>
    %c32_i32_9 = arith.constant 32 : i32
    %22 = vector.broadcast %c32_i32_9 : i32 to vector<4x8x128xi32>
    %23 = arith.cmpi slt, %21, %22 : vector<4x8x128xi32>
    %24 = arith.select %23, %4, %3 : vector<4x8x128xi1>, vector<4x8x128xf32>
    %25 = vector.shape_cast %1 : vector<8x128xf32> to vector<1x8x128xf32>
    %26 = vector.broadcast %25 : vector<1x8x128xf32> to vector<4x8x128xf32>
    %27 = arith.mulf %0, %26 : vector<4x8x128xf32>
    %28 = vector.shape_cast %2 : vector<8x128xf32> to vector<1x8x128xf32>
    %29 = vector.broadcast %28 : vector<1x8x128xf32> to vector<4x8x128xf32>
    %30 = arith.mulf %24, %29 : vector<4x8x128xf32>
    %31 = arith.addf %27, %30 : vector<4x8x128xf32>
    %c0_10 = arith.constant 0 : index
    %c0_11 = arith.constant 0 : index
    %c0_12 = arith.constant 0 : index
    %32 = vector.load %arg5[%c0_10, %c0_11, %c0_12] : memref<4x8x128xf32, #tpu.memory_space<vmem>>, vector<4x8x128xf32>
    tpu.vector_store %arg5[%c0_10, %c0_11, %c0_12], %31 {strides = array<i32>} : memref<4x8x128xf32, #tpu.memory_space<vmem>>, vector<4x8x128xf32>,
    return
  }
  func.func @transform_0(%arg0: i32, %arg1: i32) -> (i32, i32, i32) {
    %c0_i32 = arith.constant 0 : i32
    %c0_i32_0 = arith.constant 0 : i32
    return %arg0, %arg1, %c0_i32 : i32, i32, i32
  }
  func.func @transform_1(%arg0: i32, %arg1: i32) -> (i32, i32) {
    %c0_i32 = arith.constant 0 : i32
    %c0_i32_0 = arith.constant 0 : i32
    return %arg1, %c0_i32 : i32, i32
  }
  func.func @transform_2(%arg0: i32, %arg1: i32) -> (i32, i32) {
    %c0_i32 = arith.constant 0 : i32
    %c0_i32_0 = arith.constant 0 : i32
    return %arg1, %c0_i32 : i32, i32
  }
  func.func @transform_3(%arg0: i32, %arg1: i32) -> (i32, i32, i32) {
    %c0_i32 = arith.constant 0 : i32
    %c0_i32_0 = arith.constant 0 : i32
    return %arg0, %arg1, %c0_i32 : i32, i32, i32
  }
}

</mosaic_0001>

<llo_original>
// kernel: tpu_custom_call.1
$region0: #{tpu_custom_call.1}
  #allocation0 [shape = 'u32[]', space=smem, size = 0x4, offset = 0x4, fixed_abs, tag = 'smem constant byte address 0x4 - core index']
  #allocation1 [shape = 'u32[144,128]{1,0:T(1,128)}', space=vmem, size = 0x12000, scoped, tag = 'internal scratch']
  %s0 = inlined_call_operand.hbm [shape: f32[8,8,128], index: 0, kind: input, shape index: {}]
  %s1 = inlined_call_operand.hbm [shape: f32[8,128], index: 1, kind: input, shape index: {}]
  %s2 = inlined_call_operand.hbm [shape: f32[8,128], index: 2, kind: input, shape index: {}]
  %s3 = inlined_call_operand.hbm [shape: f32[8,8,128], index: 3, kind: output, shape index: {}]
  %s4 = sld [smem:[#allocation0]]
  $region57: #{tpu_custom_call.1} parent=0
    _
  %s6 = ssub.s32 1, %s4
  %s7 = scalar_select 0, %s6, %s4
  $region1: #{tpu_custom_call.1} parent=0
    #allocation2 [shape = 'u8[32768]{0}', space=vmem, size = 0x8000, scoped, tag = 'input window, operand 0']
    #allocation3 [shape = 's32[2]{0}', space=sflag, size = 0x8, scoped, tag = 'scoped memory for tpu_custom_call.1']
    #allocation4 [shape = 's32[2]{0}', space=sflag, size = 0x8, scoped, tag = 'scoped memory for tpu_custom_call.1']
    #allocation5 [shape = 'u8[4096]{0}', space=vmem, size = 0x1000, scoped, tag = 'input window, operand 1, single buffered']
    #allocation6 [shape = 's32[1]{0}', space=sflag, size = 0x4, scoped, tag = 'scoped memory for tpu_custom_call.1']
    #allocation7 [shape = 'u8[4096]{0}', space=vmem, size = 0x1000, scoped, tag = 'input window, operand 2, single buffered']
    #allocation8 [shape = 'u8[32768]{0}', space=vmem, size = 0x8000, scoped, tag = 'output window, operand 0']
    %8 = vsyncpa [#allocation3], 0
    %s9 = scalar_lea.sflag [#allocation3], 1
    %10 = vsyncpa %s9, 0
    %11 = vsyncpa [#allocation6], 0
    %12 = vsyncpa [#allocation4], 0
    %s13 = scalar_lea.sflag [#allocation4], 1
    %14 = vsyncpa %s13, 0
    loop: start=0, step=1, limit=4
    $region2: #{tpu_custom_call.1} parent=1 // loop_pre_header
      _
    $region3: #{tpu_custom_call.1} parent=1 // loop_header
      %s16 = sphi 0, %s20
      %p17 = scmp.ge.s32.totalorder %s16, 4
      %s23 = sphi 0, %s35
      %s24 = sphi 0, %s31
      %s25 = sphi 0, %s23
      %s26 = sphi 0, %s24
      %s27 = sphi 0, %s25
      %s28 = sphi 0, %s26
      %s40 = sphi 0, %s42
      %s43 = sphi 0, %s40
      %s44 = sphi 0, %s43
      %s60 = sphi 0, %s44
      %s66 = sphi 0, %s68
      %s69 = sphi 0, %s66
      %s70 = sphi 0, %s69
      %s86 = sphi 0, %s70
      %s92 = sphi 0, %s94
      %s95 = sphi 0, %s92
      %s96 = sphi 0, %s95
      %s112 = sphi 0, %s96
      %s120 = sphi 0, %s122
      %s123 = sphi 0, %s120
      %s124 = sphi 0, %s123
      %s140 = sphi 0, %s124
    $region4: #{tpu_custom_call.1} parent=1 // loop_header_branch
      %19 = sbr.rel (%p17) target = $region8
    $region5: #{tpu_custom_call.1} parent=1 // loop_body
      %s21 = ssub.s32 %s16, 1
      %s22 = ssub.s32 %s16, 2
      %s29 = sadd.s32 1, %s24
      %p30 = scmp.ge.s32.totalorder %s29, 1
      %s31 = scalar_select %p30, 0, %s29
      %s32 = sadd.s32 1, %s23
      %s33 = scalar_select %p30, %s32, %s23
      %p34 = scmp.ge.s32.totalorder %s33, 2
      %s35 = scalar_select %p34, 0, %s33
      %s36 = ssub.s32 %s23, %s35
      %s37 = ssub.s32 %s24, %s31
      %s38 = sor.u32 %s36, %s37
      %p39 = scmp.eq.s32.totalorder %s38, 0
      %s41 = sadd.s32 %s40, 1
      %s42 = scalar_select %p39, %s40, %s41
      %p45 = pneg %p39
      %p46 = scmp.eq.s32.totalorder %s16, 1
      %p47 = por %p45, %p46
      %p48 = scmp.ne.s32.totalorder %s40, %s43
      %p49 = scmp.eq.s32.totalorder %s16, 0
      %p50 = por %p48, %p49
      %p51 = scmp.ne.s32.totalorder %s40, %s43
      %p52 = scmp.eq.s32.totalorder %s21, 1
      %p53 = por %p51, %p52
      %p54 = scmp.ne.s32.totalorder %s43, %s44
      %p55 = scmp.eq.s32.totalorder %s21, 0
      %p56 = por %p54, %p55
      %p57 = scmp.ne.s32.totalorder %s43, %s44
      %p58 = scmp.eq.s32.totalorder %s22, 1
      %p59 = por %p57, %p58
      %p61 = scmp.ne.s32.totalorder %s44, %s60
      %p62 = scmp.eq.s32.totalorder %s22, 0
      %p63 = por %p61, %p62
      %s64 = ssub.s32 %s24, %s31
      %p65 = scmp.eq.s32.totalorder %s64, 0
      %s67 = sadd.s32 %s66, 1
      %s68 = scalar_select %p65, %s66, %s67
      %p71 = pneg %p65
      %p72 = scmp.eq.s32.totalorder %s16, 1
      %p73 = por %p71, %p72
      %p74 = scmp.ne.s32.totalorder %s66, %s69
      %p75 = scmp.eq.s32.totalorder %s16, 0
      %p76 = por %p74, %p75
      %p77 = scmp.ne.s32.totalorder %s66, %s69
      %p78 = scmp.eq.s32.totalorder %s21, 1
      %p79 = por %p77, %p78
      %p80 = scmp.ne.s32.totalorder %s69, %s70
      %p81 = scmp.eq.s32.totalorder %s21, 0
      %p82 = por %p80, %p81
      %p83 = scmp.ne.s32.totalorder %s69, %s70
      %p84 = scmp.eq.s32.totalorder %s22, 1
      %p85 = por %p83, %p84
      %p87 = scmp.ne.s32.totalorder %s70, %s86
      %p88 = scmp.eq.s32.totalorder %s22, 0
      %p89 = por %p87, %p88
      %s90 = ssub.s32 %s24, %s31
      %p91 = scmp.eq.s32.totalorder %s90, 0
      %s93 = sadd.s32 %s92, 1
      %s94 = scalar_select %p91, %s92, %s93
      %p97 = pneg %p91
      %p98 = scmp.eq.s32.totalorder %s16, 1
      %p99 = por %p97, %p98
      %p100 = scmp.ne.s32.totalorder %s92, %s95
      %p101 = scmp.eq.s32.totalorder %s16, 0
      %p102 = por %p100, %p101
      %p103 = scmp.ne.s32.totalorder %s92, %s95
      %p104 = scmp.eq.s32.totalorder %s21, 1
      %p105 = por %p103, %p104
      %p106 = scmp.ne.s32.totalorder %s95, %s96
      %p107 = scmp.eq.s32.totalorder %s21, 0
      %p108 = por %p106, %p107
      %p109 = scmp.ne.s32.totalorder %s95, %s96
      %p110 = scmp.eq.s32.totalorder %s22, 1
      %p111 = por %p109, %p110
      %p113 = scmp.ne.s32.totalorder %s96, %s112
      %p114 = scmp.eq.s32.totalorder %s22, 0
      %p115 = por %p113, %p114
      %s116 = ssub.s32 %s23, %s35
      %s117 = ssub.s32 %s24, %s31
      %s118 = sor.u32 %s116, %s117
      %p119 = scmp.eq.s32.totalorder %s118, 0
      %s121 = sadd.s32 %s120, 1
      %s122 = scalar_select %p119, %s120, %s121
      %p125 = pneg %p119
      %p126 = scmp.eq.s32.totalorder %s16, 1
      %p127 = por %p125, %p126
      %p128 = scmp.ne.s32.totalorder %s120, %s123
      %p129 = scmp.eq.s32.totalorder %s16, 0
      %p130 = por %p128, %p129
      %p131 = scmp.ne.s32.totalorder %s120, %s123
      %p132 = scmp.eq.s32.totalorder %s21, 1
      %p133 = por %p131, %p132
      %p134 = scmp.ne.s32.totalorder %s123, %s124
      %p135 = scmp.eq.s32.totalorder %s21, 0
      %p136 = por %p134, %p135
      %p137 = scmp.ne.s32.totalorder %s123, %s124
      %p138 = scmp.eq.s32.totalorder %s22, 1
      %p139 = por %p137, %p138
      %p141 = scmp.ne.s32.totalorder %s124, %s140
      %p142 = scmp.eq.s32.totalorder %s22, 0
      %p143 = por %p141, %p142
      %p144 = scmp.le.s32.totalorder 1, %s16
      %p145 = scmp.lt.s32.totalorder %s16, 3
      %p146 = pnand %p144, %p145
      %p147 = pneg %p146
      // Predicated region
      $region9: #{tpu_custom_call.1} parent=5 // pred_check
        _
      $region10: #{tpu_custom_call.1} parent=5 // pred_check_branch
        %149 = sbr.rel (%p146) target = $region12
      $region11: #{tpu_custom_call.1} parent=5 // pred_region
        %s150 = ssub.s32 %s16, 1
        // Predicated region
        $region13: #{tpu_custom_call.1} parent=11 // pred_check
          %p151 = pneg %p82
        $region14: #{tpu_custom_call.1} parent=11 // pred_check_branch
          %153 = sbr.rel (%p151) target = $region16
        $region15: #{tpu_custom_call.1} parent=11 // pred_region
          %s155 = ssub.s32 128, 128
          %156 = vsyncadd [#allocation6], %s155
          %s157 = smul.addr %s26, 128
          %s158 = scalar_lea.hbm %s1, %s157
          %s160 = sshll.u32 [#allocation5], 4
          %s161 = int_to_ptr.vmem [resolvable:$true] %s160
          %163 = dma.hbm_to_vmem [thread:$0]  %s158, 128, %s161, [#allocation6]
        $region16: #{tpu_custom_call.1} parent=11 // pred_fallthru
          _
        // Predicated region
        $region17: #{tpu_custom_call.1} parent=11 // pred_check
          %p164 = pneg %p108
        $region18: #{tpu_custom_call.1} parent=11 // pred_check_branch
          %166 = sbr.rel (%p164) target = $region20
        $region19: #{tpu_custom_call.1} parent=11 // pred_region
          %s168 = ssub.s32 128, 128
          %169 = vsyncadd [#allocation6], %s168
          %s170 = smul.addr %s26, 128
          %s171 = scalar_lea.hbm %s2, %s170
          %s173 = sshll.u32 [#allocation7], 4
          %s174 = int_to_ptr.vmem [resolvable:$true] %s173
          %176 = dma.hbm_to_vmem [thread:$0]  %s171, 128, %s174, [#allocation6]
        $region20: #{tpu_custom_call.1} parent=11 // pred_fallthru
          _
      $region12: #{tpu_custom_call.1} parent=5 // pred_fallthru
        _
      %p177 = scmp.lt.s32.totalorder %s16, 2
      // Predicated region
      $region21: #{tpu_custom_call.1} parent=5 // pred_check
        %p178 = pneg %p177
      $region22: #{tpu_custom_call.1} parent=5 // pred_check_branch
        %180 = sbr.rel (%p178) target = $region24
      $region23: #{tpu_custom_call.1} parent=5 // pred_region
        // Predicated region
        $region25: #{tpu_custom_call.1} parent=23 // pred_check
          %p181 = pneg %p50
        $region26: #{tpu_custom_call.1} parent=23 // pred_check_branch
          %183 = sbr.rel (%p181) target = $region28
        $region27: #{tpu_custom_call.1} parent=23 // pred_region
          %s184 = sand.u32 %s40, 1
          %s185 = scalar_lea.sflag [#allocation3], %s184
          %s186 = sand.u32 %s40, 1
          %s187 = smul.addr %s186, 32
          %s188 = scalar_lea.vmem [#allocation2], %s187
          %s189 = smul.u32 4, %s23
          %s191 = ssub.s32 512, 512
          %192 = vsyncadd %s185, %s191
          %s193 = sadd.s32 %s24, %s189
          %s194 = smul.addr %s193, 128
          %s195 = scalar_lea.hbm %s0, %s194
          %s196 = sshll.u32 %s188, 4
          %s197 = int_to_ptr.vmem [resolvable:$true] %s196
          %202 = dma.hbm_to_vmem [thread:$0]  %s195, 512, %s197, %s185, 128, 128, 8
        $region28: #{tpu_custom_call.1} parent=23 // pred_fallthru
          _
      $region24: #{tpu_custom_call.1} parent=5 // pred_fallthru
        _
      %p203 = scmp.le.s32.totalorder 1, %s16
      %p204 = scmp.lt.s32.totalorder %s16, 3
      %p205 = pnand %p203, %p204
      %p206 = pneg %p205
      // Predicated region
      $region29: #{tpu_custom_call.1} parent=5 // pred_check
        _
      $region30: #{tpu_custom_call.1} parent=5 // pred_check_branch
        %208 = sbr.rel (%p205) target = $region32
      $region31: #{tpu_custom_call.1} parent=5 // pred_region
        %s209 = ssub.s32 %s16, 1
        %s210 = sand.u32 %s43, 1
        %s211 = scalar_lea.sflag [#allocation3], %s210
        %s212 = sand.u32 %s43, 1
        %s213 = smul.addr %s212, 32
        %s214 = scalar_lea.vmem [#allocation2], %s213
        // Predicated region
        $region33: #{tpu_custom_call.1} parent=31 // pred_check
          %p215 = pneg %p56
        $region34: #{tpu_custom_call.1} parent=31 // pred_check_branch
          %217 = sbr.rel (%p215) target = $region36
        $region35: #{tpu_custom_call.1} parent=31 // pred_region
          %218 = dma.done %s211, 512
        $region36: #{tpu_custom_call.1} parent=31 // pred_fallthru
          _
        // Predicated region
        $region37: #{tpu_custom_call.1} parent=31 // pred_check
          %p219 = pneg %p82
        $region38: #{tpu_custom_call.1} parent=31 // pred_check_branch
          %221 = sbr.rel (%p219) target = $region40
        $region39: #{tpu_custom_call.1} parent=31 // pred_region
          %222 = dma.done [#allocation6], 128
        $region40: #{tpu_custom_call.1} parent=31 // pred_fallthru
          _
        // Predicated region
        $region41: #{tpu_custom_call.1} parent=31 // pred_check
          %p223 = pneg %p108
        $region42: #{tpu_custom_call.1} parent=31 // pred_check_branch
          %225 = sbr.rel (%p223) target = $region44
        $region43: #{tpu_custom_call.1} parent=31 // pred_region
          %226 = dma.done [#allocation6], 128
        $region44: #{tpu_custom_call.1} parent=31 // pred_fallthru
          _
        %s227 = sand.u32 %s43, 1
        %s228 = scalar_lea.sflag [#allocation3], %s227
        %s229 = sand.u32 %s43, 1
        %s230 = smul.addr %s229, 32
        %s231 = scalar_lea.vmem [#allocation2], %s230
        %p232 = pneg %p56
        %p233 = pneg %p53
        %p234 = pneg %p82
        %p235 = pneg %p79
        %p236 = pneg %p108
        %p237 = pneg %p105
        %p238 = pneg %p136
        %p239 = pneg %p133
        %s240 = sand.u32 %s123, 1
        %s241 = scalar_lea.sflag [#allocation4], %s240
        %s242 = sand.u32 %s123, 1
        %s243 = smul.addr %s242, 32
        %s244 = scalar_lea.vmem [#allocation8], %s243
        %s245 = smul.u32 4, %s25
        %s246 = smul.u32 4, %s25
        %v247 = vld [vmem:[%s214] sm:$0xff]
        %v248 = vld [vmem:[%s214 + $0x8] sm:$0xff]
        %v249 = vld [vmem:[%s214 + $0x10] sm:$0xff]
        %v250 = vld [vmem:[%s214 + $0x18] sm:$0xff]
        %v251 = vld [vmem:[#allocation5] sm:$0xff]
        %v252 = vld [vmem:[#allocation7] sm:$0xff]
        %253 = vrot.lane.b32.xlu0 %v247, 32
        %v254 = vpop.permute.xlu0 %253
        %255 = vrot.lane.b32.xlu0 %v248, 32
        %v256 = vpop.permute.xlu0 %255
        %257 = vrot.lane.b32.xlu0 %v249, 32
        %v258 = vpop.permute.xlu0 %257
        %259 = vrot.lane.b32.xlu0 %v250, 32
        %v260 = vpop.permute.xlu0 %259
        %261 = vrot.lane.b32.xlu0 %v247, 96
        %v262 = vpop.permute.xlu0 %261
        %263 = vrot.lane.b32.xlu0 %v248, 96
        %v264 = vpop.permute.xlu0 %263
        %265 = vrot.lane.b32.xlu0 %v249, 96
        %v266 = vpop.permute.xlu0 %265
        %267 = vrot.lane.b32.xlu0 %v250, 96
        %v268 = vpop.permute.xlu0 %267
        %v269 = vlaneseq
        %v270 = vand.u32 %v269, 127
        %vm271 = vcmp.lt.s32.totalorder %v270, 0
        %v272 = vsub.s32 0, %v270
        %v273 = vsel %vm271, %v272, %v270
        %v274 = vshrl.u32 %v273, 6
        %v275 = vand.u32 %v273, 63
        %v276 = vsub.s32 0, %v275
        %v277 = vsel %vm271, %v276, %v275
        %vm278 = vcmp.ne.s32.totalorder %v277, 0
        %vm279 = vcmp.lt.s32.totalorder %v277, 0
        %vm280 = vmand %vm279, %vm278
        %v281 = vadd.s32 %v277, 64
        %v282 = vsel %vm280, %v281, %v277
        %vm283 = vcmp.lt.s32.totalorder %v282, 32
        %v284 = vsel %vm283, %v262, %v254
        %v285 = vsel %vm283, %v264, %v256
        %v286 = vsel %vm283, %v266, %v258
        %v287 = vsel %vm283, %v268, %v260
        %v288 = vmul.f32 %v247, %v251
        %v289 = vmul.f32 %v248, %v251
        %v290 = vmul.f32 %v249, %v251
        %v291 = vmul.f32 %v250, %v251
        %v292 = vmul.f32 %v284, %v252
        %v293 = vmul.f32 %v285, %v252
        %v294 = vmul.f32 %v286, %v252
        %v295 = vmul.f32 %v287, %v252
        %v296 = vadd.f32 %v288, %v292
        %v297 = vadd.f32 %v289, %v293
        %v298 = vadd.f32 %v290, %v294
        %v299 = vadd.f32 %v291, %v295
        %300 = vst [vmem:[%s244] sm:$0xff] %v296
        %301 = vst [vmem:[%s244 + $0x8] sm:$0xff] %v297
        %302 = vst [vmem:[%s244 + $0x10] sm:$0xff] %v298
        %303 = vst [vmem:[%s244 + $0x18] sm:$0xff] %v299
        %s304 = sand.u32 %s123, 1
        %s305 = scalar_lea.sflag [#allocation4], %s304
        %s306 = sand.u32 %s123, 1
        %s307 = smul.addr %s306, 32
        %s308 = scalar_lea.vmem [#allocation8], %s307
        // Predicated region
        $region45: #{tpu_custom_call.1} parent=31 // pred_check
          %p309 = pneg %p133
        $region46: #{tpu_custom_call.1} parent=31 // pred_check_branch
          %311 = sbr.rel (%p309) target = $region48
        $region47: #{tpu_custom_call.1} parent=31 // pred_region
          %s312 = smul.u32 4, %s25
          %s314 = ssub.s32 512, 512
          %315 = vsyncadd %s305, %s314
          %s316 = sadd.s32 %s26, %s312
          %s317 = smul.addr %s316, 128
          %s318 = scalar_lea.hbm %s3, %s317
          %s319 = sshll.u32 %s308, 4
          %s320 = int_to_ptr.vmem [resolvable:$true] %s319
          %325 = dma.vmem_to_hbm [thread:$0]  %s320, 512, %s318, %s305, 128, 128, 8
        $region48: #{tpu_custom_call.1} parent=31 // pred_fallthru
          _
      $region32: #{tpu_custom_call.1} parent=5 // pred_fallthru
        _
      %p326 = scmp.le.s32.totalorder 2, %s16
      // Predicated region
      $region49: #{tpu_custom_call.1} parent=5 // pred_check
        %p327 = pneg %p326
      $region50: #{tpu_custom_call.1} parent=5 // pred_check_branch
        %329 = sbr.rel (%p327) target = $region52
      $region51: #{tpu_custom_call.1} parent=5 // pred_region
        %s330 = ssub.s32 %s16, 2
        // Predicated region
        $region53: #{tpu_custom_call.1} parent=51 // pred_check
          %p331 = pneg %p139
        $region54: #{tpu_custom_call.1} parent=51 // pred_check_branch
          %333 = sbr.rel (%p331) target = $region56
        $region55: #{tpu_custom_call.1} parent=51 // pred_region
          %s334 = sand.u32 %s124, 1
          %s335 = scalar_lea.sflag [#allocation4], %s334
          %s336 = sand.u32 %s124, 1
          %s337 = smul.addr %s336, 32
          %s338 = scalar_lea.vmem [#allocation8], %s337
          %339 = dma.done %s335, 512
        $region56: #{tpu_custom_call.1} parent=51 // pred_fallthru
          _
      $region52: #{tpu_custom_call.1} parent=5 // pred_fallthru
        _
    $region6: #{tpu_custom_call.1} parent=1 // loop_footer
      %s20 = sadd.s32 1, %s16
    $region7: #{tpu_custom_call.1} parent=1 // loop_footer_branch
      %15 = sbr.rel target = $region3
    $region8: #{tpu_custom_call.1} parent=1 // loop_exit
      _
    %340 = vsyncpa [#allocation3], 1
    %s341 = scalar_lea.sflag [#allocation3], 1
    %342 = vsyncpa %s341, 1
    %343 = vsyncpa [#allocation6], 1
    %344 = vsyncpa [#allocation4], 1
    %s345 = scalar_lea.sflag [#allocation4], 1
    %346 = vsyncpa %s345, 1

</llo_original>
